<compile_context>
chip_gen: v5e
topology: v5e:2x2
jax: 0.10.0
libtpu: 0.0.40
codegen_flags: <defaults>
</compile_context>

<pallas_src>
import jax
import jax.numpy as jnp
from jax.experimental import pallas as pl
from jax.experimental.pallas import tpu as pltpu

NEG_SLOPE = 0.01  # F.leaky_relu default


def _leaky_relu(x):
    # Kept in the f32 accumulator (portable to v5e, which has no bf16 VALU).
    return jnp.where(x > 0, x, NEG_SLOPE * x)


def _round_up(n, m):
    return ((n + m - 1) // m) * m


def _make_kernel(emit_logits):
    def kernel(x_ref,
               w1_ref, b1_ref,
               w2_ref, b2_ref,
               w3_ref, b3_ref,
               w4_ref, b4_ref,
               o_ref, *dbg_refs):
        # bf16 operands into the MXU, f32 accumulation, f32 bias/activation.
        x = x_ref[...].astype(jnp.bfloat16)

        h = jnp.dot(x, w1_ref[...], preferred_element_type=jnp.float32) + b1_ref[...]
        h = _leaky_relu(h)

        h = jnp.dot(h.astype(jnp.bfloat16), w2_ref[...],
                    preferred_element_type=jnp.float32) + b2_ref[...]
        h = _leaky_relu(h)

        h = jnp.dot(h.astype(jnp.bfloat16), w3_ref[...],
                    preferred_element_type=jnp.float32) + b3_ref[...]
        h = _leaky_relu(h)

        # Layer 4 off the MXU (perf review): VPU multiply against the (1,64) weight
        # row + XLU lane reduction; scalar bias comes from SMEM.
        logits = jnp.sum(h * w4_ref[...], axis=-1, keepdims=True) + b4_ref[0, 0]

        if emit_logits:
            # Debug/coverage output: pre-softmax logits so the MXU path is testable.
            dbg_refs[0][...] = logits.astype(dbg_refs[0].dtype)

        # torch.softmax over the size-1 output axis is identically 1.0:
        #     softmax(z)_0 = exp(z_0 - z_0) / exp(z_0 - z_0) = 1
        # Emit the exact closed form.  When emit_logits=False the layer-1..4 dots are
        # value-dead and Mosaic DCEs them, so this path only pays x/out DMA;
        # net_forward_fast() below removes even that.
        o_ref[...] = jnp.ones_like(logits).astype(o_ref.dtype)

    return kernel


def _pick_tb(B):
    """Batch tile: >= 2 grid steps when possible (v7x has 2 TensorCores), capped at
    512 rows; multiple of 128 for B >= 256 (full MXU M dim), multiple of 16 otherwise
    (clean bf16 sublane packing)."""
    if B > 512:
        return 512
    if B >= 256:
        return _round_up(pl.cdiv(B, 2), 128)
    return max(16, _round_up(pl.cdiv(B, 2), 16))


def _derive_vmem_limit(tb, d_in, resident_arrays, n_outputs):
    """Perf review: derive the VMEM budget from actual sizes instead of hardcoding 32 MiB."""
    resident = 2 * sum(int(a.size) * a.dtype.itemsize for a in resident_arrays)  # default double-buffering
    streamed = 2 * (tb * d_in * 4 + n_outputs * tb * 4)                          # x tile + output tile(s)
    acts = tb * (1024 + 256 + 64) * 8                                            # f32 intermediates + bf16 copies
    needed = int(1.5 * (resident + streamed + acts)) + (4 << 20)                 # generous headroom
    return max(16 << 20, min(needed, 48 << 20))  # stay well under v7x's 64 MiB physical VMEM


def net_forward_fast(x):
    """Perf-review item #1: softmax over the size-1 output axis is identically 1.0,
    so the network output is a constant -- skip the kernel, the ~0.6 MiB weight DMA and
    the x read entirely.  Prefer this in production; net_forward() keeps the full
    Pallas path (and is what you'd use once the epilogue is a real activation)."""
    return jnp.broadcast_to(jnp.float32(1.0), (x.shape[0], 1))


def net_forward(x, params, *, debug_logits=False):
    """Pallas forward pass of `Net`.

    x: (B, input_size) f32.  params: f32 weights stored as (in, out), biases (1, out).
    Returns the (B, 1) softmax output (identically 1.0).  With debug_logits=True also
    returns the pre-softmax logits so the bf16 MXU path can be numerically validated.
    """
    B, d_in = x.shape
    tb = _pick_tb(B)
    grid = (pl.cdiv(B, tb),)   # ragged tail handled by Pallas -- no wrapper pad/slice

    # bf16 weights for layers 1-3 (halves the dominant weight-DMA stream, native MXU dtype).
    w1 = params["w1"].astype(jnp.bfloat16)
    w2 = params["w2"].astype(jnp.bfloat16)
    w3 = params["w3"].astype(jnp.bfloat16)
    # Layer 4 runs on the VPU as a (1, 64) f32 row; biases stay f32 for the f32 accumulator.
    w4_row = params["w4"].reshape(1, -1).astype(jnp.float32)
    b1, b2, b3, b4 = params["b1"], params["b2"], params["b3"], params["b4"]

    def resident(arr):
        # Full-array block + constant index_map -> DMA'd once, VMEM-resident across steps.
        return pl.BlockSpec(arr.shape, lambda i: (0, 0))

    def row_spec():
        return pl.BlockSpec((tb, 1), lambda i: (i, 0))

    n_outputs = 2 if debug_logits else 1
    if debug_logits:
        out_shape = (jax.ShapeDtypeStruct((B, 1), jnp.float32),
                     jax.ShapeDtypeStruct((B, 1), jnp.float32))
        out_specs = (row_spec(), row_spec())
    else:
        out_shape = jax.ShapeDtypeStruct((B, 1), jnp.float32)
        out_specs = row_spec()

    resident_arrays = (w1, b1, w2, b2, w3, b3, w4_row)
    vmem_limit = _derive_vmem_limit(tb, d_in, resident_arrays, n_outputs)

    return pl.pallas_call(
        _make_kernel(debug_logits),
        out_shape=out_shape,
        grid=grid,
        in_specs=[
            pl.BlockSpec((tb, d_in), lambda i: (i, 0)),          # x: streamed per batch tile
            resident(w1), resident(b1),
            resident(w2), resident(b2),
            resident(w3), resident(b3),
            resident(w4_row),
            pl.BlockSpec(memory_space=pltpu.MemorySpace.SMEM),   # b4: (1,1) scalar in SMEM
        ],
        out_specs=out_specs,
        compiler_params=pltpu.CompilerParams(
            dimension_semantics=("parallel",),   # batch tiles shard across v7x's 2 TCs
            vmem_limit_bytes=vmem_limit,
        ),
    )(x, w1, b1, w2, b2, w3, b3, w4_row, b4)


def init_params(key, input_size, l1=1024, l2=256, l3=64):
    """Deterministic synthetic parameters (PyTorch nn.Linear init, stored as (in, out))."""
    dims = [(input_size, l1), (l1, l2), (l2, l3), (l3, 1)]
    params = {}
    for i, (din, dout) in enumerate(dims, start=1):
        key, kw, kb = jax.random.split(key, 3)
        bound = 1.0 / jnp.sqrt(jnp.float32(din))
        params[f"w{i}"] = jax.random.uniform(
            kw, (din, dout), jnp.float32, minval=-bound, maxval=bound)
        params[f"b{i}"] = jax.random.uniform(
            kb, (1, dout), jnp.float32, minval=-bound, maxval=bound)
    return params


def reference_forward(x, params):
    """Full f32 reference (all 4 layers + softmax), exactly as the PyTorch module."""
    h = _leaky_relu(x @ params["w1"] + params["b1"])
    h = _leaky_relu(h @ params["w2"] + params["b2"])
    h = _leaky_relu(h @ params["w3"] + params["b3"])
    logits = h @ params["w4"] + params["b4"]
    return jax.nn.softmax(logits, axis=-1), logits


if __name__ == "__main__":
    key = jax.random.PRNGKey(0)
    key, kx1, kx2 = jax.random.split(key, 3)

    input_size = 32
    params = init_params(key, input_size)

    # Case 1: even batch -> 2 full tiles of 128 rows (one per v7x TensorCore).
    x1 = jax.random.normal(kx1, (256, input_size), jnp.float32)
    out1 = jax.block_until_ready(net_forward(x1, params))
    ref1, _ = reference_forward(x1, params)
    assert out1.shape == (256, 1), out1.shape
    assert jnp.allclose(out1, ref1, atol=1e-6), (out1[:4], ref1[:4])

    # Fast path (perf-review item #1): constant output, no kernel / no DMA at all.
    fast1 = jax.block_until_ready(net_forward_fast(x1))
    assert fast1.shape == (256, 1) and jnp.allclose(fast1, ref1, atol=1e-6)

    # Case 2: ragged batch (no wrapper pad/slice; Pallas masks the tail block) with
    # debug_logits=True so the bf16 MXU path (layers 1-4) gets real numeric coverage.
    x2 = jax.random.normal(kx2, (200, input_size), jnp.float32)
    out2, logits2 = jax.block_until_ready(net_forward(x2, params, debug_logits=True))
    ref2, ref_logits2 = reference_forward(x2, params)
    assert out2.shape == (200, 1) and logits2.shape == (200, 1)
    assert jnp.allclose(out2, ref2, atol=1e-6)
    # bf16 weights / bf16-cast activations with f32 accumulation: loose tolerance.
    assert jnp.allclose(logits2, ref_logits2, atol=5e-2, rtol=5e-2), \
        float(jnp.max(jnp.abs(logits2 - ref_logits2)))

    print("KERNEL_OK")
</pallas_src>

<mosaic_0001>
module attributes {stable_mosaic.version = 11 : i64} {
  func.func @kernel(%arg0: i32, %arg1: memref<128x32xf32, #tpu.memory_space<vmem>>, %arg2: memref<32x1024xbf16, #tpu.memory_space<vmem>>, %arg3: memref<1x1024xf32, #tpu.memory_space<vmem>>, %arg4: memref<1024x256xbf16, #tpu.memory_space<vmem>>, %arg5: memref<1x256xf32, #tpu.memory_space<vmem>>, %arg6: memref<256x64xbf16, #tpu.memory_space<vmem>>, %arg7: memref<1x64xf32, #tpu.memory_space<vmem>>, %arg8: memref<1x64xf32, #tpu.memory_space<vmem>>, %arg9: memref<1x1xf32, #tpu.memory_space<smem>>, %arg10: memref<128x1xf32, #tpu.memory_space<vmem>>) attributes {dimension_semantics = [#tpu.dimension_semantics<parallel>], iteration_bounds = array<i64: 2>, scalar_prefetch = 0 : i64, scratch_operands = 0 : i64, tpu.core_type = #tpu.core_type<tc>, window_params = [{transform_indices = @transform_0, window_bounds = array<i64: 128, 32>}, {pipeline_mode = #tpu.pipeline_mode<synchronous>, transform_indices = @transform_1, window_bounds = array<i64: 32, 1024>}, {pipeline_mode = #tpu.pipeline_mode<synchronous>, transform_indices = @transform_2, window_bounds = array<i64: 1, 1024>}, {pipeline_mode = #tpu.pipeline_mode<synchronous>, transform_indices = @transform_3, window_bounds = array<i64: 1024, 256>}, {pipeline_mode = #tpu.pipeline_mode<synchronous>, transform_indices = @transform_4, window_bounds = array<i64: 1, 256>}, {pipeline_mode = #tpu.pipeline_mode<synchronous>, transform_indices = @transform_5, window_bounds = array<i64: 256, 64>}, {pipeline_mode = #tpu.pipeline_mode<synchronous>, transform_indices = @transform_6, window_bounds = array<i64: 1, 64>}, {pipeline_mode = #tpu.pipeline_mode<synchronous>, transform_indices = @transform_7, window_bounds = array<i64: 1, 64>}, {transform_indices = @transform_8, window_bounds = array<i64: 1, 1>}, {transform_indices = @transform_9, window_bounds = array<i64: 128, 1>}]} {
    %cst = arith.constant 1.000000e+00 : f32
    %0 = vector.broadcast %cst : f32 to vector<128x1xf32>
    %c0 = arith.constant 0 : index
    %c0_0 = arith.constant 0 : index
    %1 = vector.load %arg10[%c0, %c0_0] : memref<128x1xf32, #tpu.memory_space<vmem>>, vector<128x1xf32>
    tpu.vector_store %arg10[%c0, %c0_0], %0 {strides = array<i32>} : memref<128x1xf32, #tpu.memory_space<vmem>>, vector<128x1xf32>,
    return
  }
  func.func @transform_0(%arg0: i32) -> (i32, i32) {
    %c0_i32 = arith.constant 0 : i32
    %c0_i32_0 = arith.constant 0 : i32
    return %arg0, %c0_i32 : i32, i32
  }
  func.func @transform_1(%arg0: i32) -> (i32, i32) {
    %c0_i32 = arith.constant 0 : i32
    %c0_i32_0 = arith.constant 0 : i32
    %c0_i32_1 = arith.constant 0 : i32
    return %c0_i32, %c0_i32_0 : i32, i32
  }
  func.func @transform_2(%arg0: i32) -> (i32, i32) {
    %c0_i32 = arith.constant 0 : i32
    %c0_i32_0 = arith.constant 0 : i32
    %c0_i32_1 = arith.constant 0 : i32
    return %c0_i32, %c0_i32_0 : i32, i32
  }
  func.func @transform_3(%arg0: i32) -> (i32, i32) {
    %c0_i32 = arith.constant 0 : i32
    %c0_i32_0 = arith.constant 0 : i32
    %c0_i32_1 = arith.constant 0 : i32
    return %c0_i32, %c0_i32_0 : i32, i32
  }
  func.func @transform_4(%arg0: i32) -> (i32, i32) {
    %c0_i32 = arith.constant 0 : i32
    %c0_i32_0 = arith.constant 0 : i32
    %c0_i32_1 = arith.constant 0 : i32
    return %c0_i32, %c0_i32_0 : i32, i32
  }
  func.func @transform_5(%arg0: i32) -> (i32, i32) {
    %c0_i32 = arith.constant 0 : i32
    %c0_i32_0 = arith.constant 0 : i32
    %c0_i32_1 = arith.constant 0 : i32
    return %c0_i32, %c0_i32_0 : i32, i32
  }
  func.func @transform_6(%arg0: i32) -> (i32, i32) {
    %c0_i32 = arith.constant 0 : i32
    %c0_i32_0 = arith.constant 0 : i32
    %c0_i32_1 = arith.constant 0 : i32
    return %c0_i32, %c0_i32_0 : i32, i32
  }
  func.func @transform_7(%arg0: i32) -> (i32, i32) {
    %c0_i32 = arith.constant 0 : i32
    %c0_i32_0 = arith.constant 0 : i32
    %c0_i32_1 = arith.constant 0 : i32
    return %c0_i32, %c0_i32_0 : i32, i32
  }
  func.func @transform_8(%arg0: i32) -> (i32, i32) {
    %c0_i32 = arith.constant 0 : i32
    %c0_i32_0 = arith.constant 0 : i32
    %c0_i32_1 = arith.constant 0 : i32
    return %c0_i32, %c0_i32_0 : i32, i32
  }
  func.func @transform_9(%arg0: i32) -> (i32, i32) {
    %c0_i32 = arith.constant 0 : i32
    %c0_i32_0 = arith.constant 0 : i32
    return %arg0, %c0_i32 : i32, i32
  }
}

</mosaic_0001>

<llo_original>
// kernel: tpu_custom_call.1
$region0: #{tpu_custom_call.1}
  #allocation0 [shape = 'u32[]', space=smem, size = 0x4, offset = 0x4, fixed_abs, tag = 'smem constant byte address 0x4 - core index']
  #allocation1 [shape = 'u32[72,128]{1,0:T(1,128)}', space=vmem, size = 0x9000, scoped, tag = 'internal scratch']
  #allocation2 [shape = 'f32[1,1]{1,0:T(1,128)S(6)}', space=smem, size = 0x200, scoped, tag = 'scoped memory for tpu_custom_call.1']
  %s0 = inlined_call_operand.vmem [shape: f32[256,32], index: 0, kind: input, shape index: {}]
  %s1 = inlined_call_operand.vmem [shape: bf16[32,1024], index: 1, kind: input, shape index: {}]
  %s2 = inlined_call_operand.vmem [shape: f32[1,1024], index: 2, kind: input, shape index: {}]
  %s3 = inlined_call_operand.hbm [shape: bf16[1024,256], index: 3, kind: input, shape index: {}]
  %s4 = inlined_call_operand.vmem [shape: f32[1,256], index: 4, kind: input, shape index: {}]
  %s5 = inlined_call_operand.vmem [shape: bf16[256,64], index: 5, kind: input, shape index: {}]
  %s6 = inlined_call_operand.vmem [shape: f32[1,64], index: 6, kind: input, shape index: {}]
  %s7 = inlined_call_operand.vmem [shape: f32[1,64], index: 7, kind: input, shape index: {}]
  %s8 = inlined_call_operand.<no memory space> [shape: f32[1,1], index: 8, kind: input, shape index: {}]
  %s9 = inlined_call_operand.vmem [shape: f32[256,1], index: 9, kind: output, shape index: {}]
  %s10 = sld [smem:[#allocation0]]
  $region73: #{tpu_custom_call.1} parent=0
    _
  %s12 = ssub.s32 1, %s10
  %s13 = scalar_select 0, %s12, %s10
  %14 = sst [smem:[#allocation2]] %s8
  $region1: #{tpu_custom_call.1} parent=0
    #allocation3 [shape = 'u8[524288]{0}', space=vmem, size = 0x80000, scoped, tag = 'input window, operand 3, single buffered']
    #allocation4 [shape = 's32[2]{0}', space=sflag, size = 0x8, scoped, tag = 'scoped memory for tpu_custom_call.1']
    %15 = vsyncpa [#allocation4], 0
    loop: start=0, step=1, limit=4
    $region2: #{tpu_custom_call.1} parent=1 // loop_pre_header
      _
    $region3: #{tpu_custom_call.1} parent=1 // loop_header
      %s17 = sphi 0, %s21
      %p18 = scmp.ge.s32.totalorder %s17, 4
      %s27 = sphi 0, %s29
      %s30 = sphi 0, %s27
      %s31 = sphi 0, %s30
      %s47 = sphi 0, %s31
      %s51 = sphi 0, %s51
      %s53 = sphi 0, %s51
      %s54 = sphi 0, %s53
      %s68 = sphi 0, %s54
      %s72 = sphi 0, %s72
      %s74 = sphi 0, %s72
      %s75 = sphi 0, %s74
      %s89 = sphi 0, %s75
      %s93 = sphi 0, %s93
      %s95 = sphi 0, %s93
      %s96 = sphi 0, %s95
      %s110 = sphi 0, %s96
      %s114 = sphi 0, %s114
      %s116 = sphi 0, %s114
      %s117 = sphi 0, %s116
      %s131 = sphi 0, %s117
      %s135 = sphi 0, %s135
      %s137 = sphi 0, %s135
      %s138 = sphi 0, %s137
      %s152 = sphi 0, %s138
      %s156 = sphi 0, %s156
      %s158 = sphi 0, %s156
      %s159 = sphi 0, %s158
      %s173 = sphi 0, %s159
      %s177 = sphi 0, %s177
      %s179 = sphi 0, %s177
      %s180 = sphi 0, %s179
      %s194 = sphi 0, %s180
      %s198 = sphi 0, %s198
      %s200 = sphi 0, %s198
      %s201 = sphi 0, %s200
      %s215 = sphi 0, %s201
      %s221 = sphi 0, %s223
      %s224 = sphi 0, %s221
      %s225 = sphi 0, %s224
      %s241 = sphi 0, %s225
    $region4: #{tpu_custom_call.1} parent=1 // loop_header_branch
      %20 = sbr.rel (%p18) target = $region8
    $region5: #{tpu_custom_call.1} parent=1 // loop_body
      %s22 = ssub.s32 %s17, 1
      %s23 = ssub.s32 %s17, 2
      %s24 = sadd.s32 %s17, 1
      %s25 = ssub.s32 %s17, %s24
      %p26 = scmp.eq.s32.totalorder %s25, 0
      %s28 = sadd.s32 %s27, 1
      %s29 = scalar_select %p26, %s27, %s28
      %p32 = pneg %p26
      %p33 = scmp.eq.s32.totalorder %s17, 1
      %p34 = por %p32, %p33
      %p35 = scmp.ne.s32.totalorder %s27, %s30
      %p36 = scmp.eq.s32.totalorder %s17, 0
      %p37 = por %p35, %p36
      %p38 = scmp.ne.s32.totalorder %s27, %s30
      %p39 = scmp.eq.s32.totalorder %s22, 1
      %p40 = por %p38, %p39
      %p41 = scmp.ne.s32.totalorder %s30, %s31
      %p42 = scmp.eq.s32.totalorder %s22, 0
      %p43 = por %p41, %p42
      %p44 = scmp.ne.s32.totalorder %s30, %s31
      %p45 = scmp.eq.s32.totalorder %s23, 1
      %p46 = por %p44, %p45
      %p48 = scmp.ne.s32.totalorder %s31, %s47
      %p49 = scmp.eq.s32.totalorder %s23, 0
      %p50 = por %p48, %p49
      %s52 = sadd.s32 %s51, 1
      %p55 = scmp.eq.s32.totalorder %s17, 1
      %p56 = scmp.ne.s32.totalorder %s51, %s53
      %p57 = scmp.eq.s32.totalorder %s17, 0
      %p58 = por %p56, %p57
      %p59 = scmp.ne.s32.totalorder %s51, %s53
      %p60 = scmp.eq.s32.totalorder %s22, 1
      %p61 = por %p59, %p60
      %p62 = scmp.ne.s32.totalorder %s53, %s54
      %p63 = scmp.eq.s32.totalorder %s22, 0
      %p64 = por %p62, %p63
      %p65 = scmp.ne.s32.totalorder %s53, %s54
      %p66 = scmp.eq.s32.totalorder %s23, 1
      %p67 = por %p65, %p66
      %p69 = scmp.ne.s32.totalorder %s54, %s68
      %p70 = scmp.eq.s32.totalorder %s23, 0
      %p71 = por %p69, %p70
      %s73 = sadd.s32 %s72, 1
      %p76 = scmp.eq.s32.totalorder %s17, 1
      %p77 = scmp.ne.s32.totalorder %s72, %s74
      %p78 = scmp.eq.s32.totalorder %s17, 0
      %p79 = por %p77, %p78
      %p80 = scmp.ne.s32.totalorder %s72, %s74
      %p81 = scmp.eq.s32.totalorder %s22, 1
      %p82 = por %p80, %p81
      %p83 = scmp.ne.s32.totalorder %s74, %s75
      %p84 = scmp.eq.s32.totalorder %s22, 0
      %p85 = por %p83, %p84
      %p86 = scmp.ne.s32.totalorder %s74, %s75
      %p87 = scmp.eq.s32.totalorder %s23, 1
      %p88 = por %p86, %p87
      %p90 = scmp.ne.s32.totalorder %s75, %s89
      %p91 = scmp.eq.s32.totalorder %s23, 0
      %p92 = por %p90, %p91
      %s94 = sadd.s32 %s93, 1
      %p97 = scmp.eq.s32.totalorder %s17, 1
      %p98 = scmp.ne.s32.totalorder %s93, %s95
      %p99 = scmp.eq.s32.totalorder %s17, 0
      %p100 = por %p98, %p99
      %p101 = scmp.ne.s32.totalorder %s93, %s95
      %p102 = scmp.eq.s32.totalorder %s22, 1
      %p103 = por %p101, %p102
      %p104 = scmp.ne.s32.totalorder %s95, %s96
      %p105 = scmp.eq.s32.totalorder %s22, 0
      %p106 = por %p104, %p105
      %p107 = scmp.ne.s32.totalorder %s95, %s96
      %p108 = scmp.eq.s32.totalorder %s23, 1
      %p109 = por %p107, %p108
      %p111 = scmp.ne.s32.totalorder %s96, %s110
      %p112 = scmp.eq.s32.totalorder %s23, 0
      %p113 = por %p111, %p112
      %s115 = sadd.s32 %s114, 1
      %p118 = scmp.eq.s32.totalorder %s17, 1
      %p119 = scmp.ne.s32.totalorder %s114, %s116
      %p120 = scmp.eq.s32.totalorder %s17, 0
      %p121 = por %p119, %p120
      %p122 = scmp.ne.s32.totalorder %s114, %s116
      %p123 = scmp.eq.s32.totalorder %s22, 1
      %p124 = por %p122, %p123
      %p125 = scmp.ne.s32.totalorder %s116, %s117
      %p126 = scmp.eq.s32.totalorder %s22, 0
      %p127 = por %p125, %p126
      %p128 = scmp.ne.s32.totalorder %s116, %s117
      %p129 = scmp.eq.s32.totalorder %s23, 1
      %p130 = por %p128, %p129
      %p132 = scmp.ne.s32.totalorder %s117, %s131
      %p133 = scmp.eq.s32.totalorder %s23, 0
      %p134 = por %p132, %p133
      %s136 = sadd.s32 %s135, 1
      %p139 = scmp.eq.s32.totalorder %s17, 1
      %p140 = scmp.ne.s32.totalorder %s135, %s137
      %p141 = scmp.eq.s32.totalorder %s17, 0
      %p142 = por %p140, %p141
      %p143 = scmp.ne.s32.totalorder %s135, %s137
      %p144 = scmp.eq.s32.totalorder %s22, 1
      %p145 = por %p143, %p144
      %p146 = scmp.ne.s32.totalorder %s137, %s138
      %p147 = scmp.eq.s32.totalorder %s22, 0
      %p148 = por %p146, %p147
      %p149 = scmp.ne.s32.totalorder %s137, %s138
      %p150 = scmp.eq.s32.totalorder %s23, 1
      %p151 = por %p149, %p150
      %p153 = scmp.ne.s32.totalorder %s138, %s152
      %p154 = scmp.eq.s32.totalorder %s23, 0
      %p155 = por %p153, %p154
      %s157 = sadd.s32 %s156, 1
      %p160 = scmp.eq.s32.totalorder %s17, 1
      %p161 = scmp.ne.s32.totalorder %s156, %s158
      %p162 = scmp.eq.s32.totalorder %s17, 0
      %p163 = por %p161, %p162
      %p164 = scmp.ne.s32.totalorder %s156, %s158
      %p165 = scmp.eq.s32.totalorder %s22, 1
      %p166 = por %p164, %p165
      %p167 = scmp.ne.s32.totalorder %s158, %s159
      %p168 = scmp.eq.s32.totalorder %s22, 0
      %p169 = por %p167, %p168
      %p170 = scmp.ne.s32.totalorder %s158, %s159
      %p171 = scmp.eq.s32.totalorder %s23, 1
      %p172 = por %p170, %p171
      %p174 = scmp.ne.s32.totalorder %s159, %s173
      %p175 = scmp.eq.s32.totalorder %s23, 0
      %p176 = por %p174, %p175
      %s178 = sadd.s32 %s177, 1
      %p181 = scmp.eq.s32.totalorder %s17, 1
      %p182 = scmp.ne.s32.totalorder %s177, %s179
      %p183 = scmp.eq.s32.totalorder %s17, 0
      %p184 = por %p182, %p183
      %p185 = scmp.ne.s32.totalorder %s177, %s179
      %p186 = scmp.eq.s32.totalorder %s22, 1
      %p187 = por %p185, %p186
      %p188 = scmp.ne.s32.totalorder %s179, %s180
      %p189 = scmp.eq.s32.totalorder %s22, 0
      %p190 = por %p188, %p189
      %p191 = scmp.ne.s32.totalorder %s179, %s180
      %p192 = scmp.eq.s32.totalorder %s23, 1
      %p193 = por %p191, %p192
      %p195 = scmp.ne.s32.totalorder %s180, %s194
      %p196 = scmp.eq.s32.totalorder %s23, 0
      %p197 = por %p195, %p196
      %s199 = sadd.s32 %s198, 1
      %p202 = scmp.eq.s32.totalorder %s17, 1
      %p203 = scmp.ne.s32.totalorder %s198, %s200
      %p204 = scmp.eq.s32.totalorder %s17, 0
      %p205 = por %p203, %p204
      %p206 = scmp.ne.s32.totalorder %s198, %s200
      %p207 = scmp.eq.s32.totalorder %s22, 1
      %p208 = por %p206, %p207
      %p209 = scmp.ne.s32.totalorder %s200, %s201
      %p210 = scmp.eq.s32.totalorder %s22, 0
      %p211 = por %p209, %p210
      %p212 = scmp.ne.s32.totalorder %s200, %s201
      %p213 = scmp.eq.s32.totalorder %s23, 1
      %p214 = por %p212, %p213
      %p216 = scmp.ne.s32.totalorder %s201, %s215
      %p217 = scmp.eq.s32.totalorder %s23, 0
      %p218 = por %p216, %p217
      %s219 = ssub.s32 %s17, %s24
      %p220 = scmp.eq.s32.totalorder %s219, 0
      %s222 = sadd.s32 %s221, 1
      %s223 = scalar_select %p220, %s221, %s222
      %p226 = pneg %p220
      %p227 = scmp.eq.s32.totalorder %s17, 1
      %p228 = por %p226, %p227
      %p229 = scmp.ne.s32.totalorder %s221, %s224
      %p230 = scmp.eq.s32.totalorder %s17, 0
      %p231 = por %p229, %p230
      %p232 = scmp.ne.s32.totalorder %s221, %s224
      %p233 = scmp.eq.s32.totalorder %s22, 1
      %p234 = por %p232, %p233
      %p235 = scmp.ne.s32.totalorder %s224, %s225
      %p236 = scmp.eq.s32.totalorder %s22, 0
      %p237 = por %p235, %p236
      %p238 = scmp.ne.s32.totalorder %s224, %s225
      %p239 = scmp.eq.s32.totalorder %s23, 1
      %p240 = por %p238, %p239
      %p242 = scmp.ne.s32.totalorder %s225, %s241
      %p243 = scmp.eq.s32.totalorder %s23, 0
      %p244 = por %p242, %p243
      %p245 = scmp.le.s32.totalorder 1, %s17
      %p246 = scmp.lt.s32.totalorder %s17, 3
      %p247 = pnand %p245, %p246
      %p248 = pneg %p247
      // Predicated region
      $region9: #{tpu_custom_call.1} parent=5 // pred_check
        _
      $region10: #{tpu_custom_call.1} parent=5 // pred_check_branch
        %250 = sbr.rel (%p247) target = $region12
      $region11: #{tpu_custom_call.1} parent=5 // pred_region
        %s251 = ssub.s32 %s17, 1
        // Predicated region
        $region13: #{tpu_custom_call.1} parent=11 // pred_check
          %p252 = pneg %p64
        $region14: #{tpu_custom_call.1} parent=11 // pred_check_branch
          %254 = sbr.rel (%p252) target = $region16
        $region15: #{tpu_custom_call.1} parent=11 // pred_region
          _
        $region16: #{tpu_custom_call.1} parent=11 // pred_fallthru
          _
        // Predicated region
        $region17: #{tpu_custom_call.1} parent=11 // pred_check
          %p255 = pneg %p85
        $region18: #{tpu_custom_call.1} parent=11 // pred_check_branch
          %257 = sbr.rel (%p255) target = $region20
        $region19: #{tpu_custom_call.1} parent=11 // pred_region
          _
        $region20: #{tpu_custom_call.1} parent=11 // pred_fallthru
          _
        // Predicated region
        $region21: #{tpu_custom_call.1} parent=11 // pred_check
          %p258 = pneg %p106
        $region22: #{tpu_custom_call.1} parent=11 // pred_check_branch
          %260 = sbr.rel (%p258) target = $region24
        $region23: #{tpu_custom_call.1} parent=11 // pred_region
          %262 = vsyncadd [#allocation4], 0
          %s263 = sshll.u32 %s3, 4
          %s264 = int_to_ptr.hbm [resolvable:$true] %s263
          %s265 = sshll.u32 [#allocation3], 4
          %s266 = int_to_ptr.vmem [resolvable:$true] %s265
          %271 = dma.hbm_to_vmem [thread:$0]  %s264, 16384, %s266, [#allocation4], 128, 128, 8
        $region24: #{tpu_custom_call.1} parent=11 // pred_fallthru
          _
        // Predicated region
        $region25: #{tpu_custom_call.1} parent=11 // pred_check
          %p272 = pneg %p127
        $region26: #{tpu_custom_call.1} parent=11 // pred_check_branch
          %274 = sbr.rel (%p272) target = $region28
        $region27: #{tpu_custom_call.1} parent=11 // pred_region
          _
        $region28: #{tpu_custom_call.1} parent=11 // pred_fallthru
          _
        // Predicated region
        $region29: #{tpu_custom_call.1} parent=11 // pred_check
          %p275 = pneg %p148
        $region30: #{tpu_custom_call.1} parent=11 // pred_check_branch
          %277 = sbr.rel (%p275) target = $region32
        $region31: #{tpu_custom_call.1} parent=11 // pred_region
          _
        $region32: #{tpu_custom_call.1} parent=11 // pred_fallthru
          _
        // Predicated region
        $region33: #{tpu_custom_call.1} parent=11 // pred_check
          %p278 = pneg %p169
        $region34: #{tpu_custom_call.1} parent=11 // pred_check_branch
          %280 = sbr.rel (%p278) target = $region36
        $region35: #{tpu_custom_call.1} parent=11 // pred_region
          _
        $region36: #{tpu_custom_call.1} parent=11 // pred_fallthru
          _
        // Predicated region
        $region37: #{tpu_custom_call.1} parent=11 // pred_check
          %p281 = pneg %p190
        $region38: #{tpu_custom_call.1} parent=11 // pred_check_branch
          %283 = sbr.rel (%p281) target = $region40
        $region39: #{tpu_custom_call.1} parent=11 // pred_region
          _
        $region40: #{tpu_custom_call.1} parent=11 // pred_fallthru
          _
        // Predicated region
        $region41: #{tpu_custom_call.1} parent=11 // pred_check
          %p284 = pneg %p211
        $region42: #{tpu_custom_call.1} parent=11 // pred_check_branch
          %286 = sbr.rel (%p284) target = $region44
        $region43: #{tpu_custom_call.1} parent=11 // pred_region
          _
        $region44: #{tpu_custom_call.1} parent=11 // pred_fallthru
          _
      $region12: #{tpu_custom_call.1} parent=5 // pred_fallthru
        _
      %p287 = scmp.lt.s32.totalorder %s17, 2
      // Predicated region
      $region45: #{tpu_custom_call.1} parent=5 // pred_check
        %p288 = pneg %p287
      $region46: #{tpu_custom_call.1} parent=5 // pred_check_branch
        %290 = sbr.rel (%p288) target = $region48
      $region47: #{tpu_custom_call.1} parent=5 // pred_region
        // Predicated region
        $region49: #{tpu_custom_call.1} parent=47 // pred_check
          %p291 = pneg %p37
        $region50: #{tpu_custom_call.1} parent=47 // pred_check_branch
          %293 = sbr.rel (%p291) target = $region52
        $region51: #{tpu_custom_call.1} parent=47 // pred_region
          %s294 = smul.u32 16, %s17
          %p295 = scmp.lt.s32.totalorder %s294, 31
          %s296 = scalar_select %p295, %s294, 31
          %s297 = smul.addr %s296, 8
          %s298 = scalar_lea.vmem %s0, %s297
          %s299 = smul.u32 16, %s17
        $region52: #{tpu_custom_call.1} parent=47 // pred_fallthru
          _
      $region48: #{tpu_custom_call.1} parent=5 // pred_fallthru
        _
      %p300 = scmp.le.s32.totalorder 1, %s17
      %p301 = scmp.lt.s32.totalorder %s17, 3
      %p302 = pnand %p300, %p301
      %p303 = pneg %p302
      // Predicated region
      $region53: #{tpu_custom_call.1} parent=5 // pred_check
        _
      $region54: #{tpu_custom_call.1} parent=5 // pred_check_branch
        %305 = sbr.rel (%p302) target = $region56
      $region55: #{tpu_custom_call.1} parent=5 // pred_region
        %s306 = ssub.s32 %s17, 1
        // Predicated region
        $region57: #{tpu_custom_call.1} parent=55 // pred_check
          %p307 = pneg %p106
        $region58: #{tpu_custom_call.1} parent=55 // pred_check_branch
          %309 = sbr.rel (%p307) target = $region60
        $region59: #{tpu_custom_call.1} parent=55 // pred_region
          %311 = dma.done [#allocation4], 16384
        $region60: #{tpu_custom_call.1} parent=55 // pred_fallthru
          _
        %s312 = smul.u32 16, %s22
        %p313 = scmp.lt.s32.totalorder %s312, 31
        %s314 = scalar_select %p313, %s312, 31
        %s315 = smul.addr %s314, 8
        %s316 = scalar_lea.vmem %s0, %s315
        %p317 = pneg %p43
        %p318 = pneg %p40
        %p319 = pneg %p64
        %p320 = pneg %p61
        %p321 = pneg %p85
        %p322 = pneg %p82
        %p323 = pneg %p106
        %p324 = pneg %p103
        %p325 = pneg %p127
        %p326 = pneg %p124
        %p327 = pneg %p148
        %p328 = pneg %p145
        %p329 = pneg %p169
        %p330 = pneg %p166
        %p331 = pneg %p190
        %p332 = pneg %p187
        %p333 = pneg %p211
        %p334 = pneg %p208
        %p335 = pneg %p237
        %p336 = pneg %p234
        %s337 = smul.u32 16, %s22
        %p338 = scmp.lt.s32.totalorder %s337, 31
        %s339 = scalar_select %p338, %s337, 31
        %s340 = smul.addr %s339, 8
        %s341 = scalar_lea.vmem %s9, %s340
        %s342 = smul.u32 16, %s22
        %p343 = scmp.lt.s32.totalorder %s342, 31
        %s344 = scalar_select %p343, %s342, 31
        %s345 = smul.addr %s344, 8
        %s346 = scalar_lea.vmem %s0, %s345
        %s347 = smul.u32 16, %s22
        %s348 = smul.u32 16, %s22
        %p349 = scmp.lt.s32.totalorder %s348, 31
        %s350 = scalar_select %p349, %s348, 31
        %s351 = smul.addr %s350, 8
        %s352 = scalar_lea.vmem %s9, %s351
        %s353 = smul.u32 16, %s22
        %vm354 = vcmask 7168
        %355 = vst.msk [vmem:[%s352] sm:$0xff] %vm354, 1.0
        %356 = vst.msk [vmem:[%s352 + $0x8] sm:$0xff] %vm354, 1.0
        %357 = vst.msk [vmem:[%s352 + $0x10] sm:$0xff] %vm354, 1.0
        %358 = vst.msk [vmem:[%s352 + $0x18] sm:$0xff] %vm354, 1.0
        %359 = vst.msk [vmem:[%s352 + $0x20] sm:$0xff] %vm354, 1.0
        %360 = vst.msk [vmem:[%s352 + $0x28] sm:$0xff] %vm354, 1.0
        %361 = vst.msk [vmem:[%s352 + $0x30] sm:$0xff] %vm354, 1.0
        %362 = vst.msk [vmem:[%s352 + $0x38] sm:$0xff] %vm354, 1.0
        %363 = vst.msk [vmem:[%s352 + $0x40] sm:$0xff] %vm354, 1.0
        %364 = vst.msk [vmem:[%s352 + $0x48] sm:$0xff] %vm354, 1.0
        %365 = vst.msk [vmem:[%s352 + $0x50] sm:$0xff] %vm354, 1.0
        %366 = vst.msk [vmem:[%s352 + $0x58] sm:$0xff] %vm354, 1.0
        %367 = vst.msk [vmem:[%s352 + $0x60] sm:$0xff] %vm354, 1.0
        %368 = vst.msk [vmem:[%s352 + $0x68] sm:$0xff] %vm354, 1.0
        %369 = vst.msk [vmem:[%s352 + $0x70] sm:$0xff] %vm354, 1.0
        %370 = vst.msk [vmem:[%s352 + $0x78] sm:$0xff] %vm354, 1.0
        %s371 = smul.u32 16, %s22
        %p372 = scmp.lt.s32.totalorder %s371, 31
        %s373 = scalar_select %p372, %s371, 31
        %s374 = smul.addr %s373, 8
        %s375 = scalar_lea.vmem %s9, %s374
        // Predicated region
        $region61: #{tpu_custom_call.1} parent=55 // pred_check
          %p376 = pneg %p234
        $region62: #{tpu_custom_call.1} parent=55 // pred_check_branch
          %378 = sbr.rel (%p376) target = $region64
        $region63: #{tpu_custom_call.1} parent=55 // pred_region
          %s379 = smul.u32 16, %s22
        $region64: #{tpu_custom_call.1} parent=55 // pred_fallthru
          _
      $region56: #{tpu_custom_call.1} parent=5 // pred_fallthru
        _
      %p380 = scmp.le.s32.totalorder 2, %s17
      // Predicated region
      $region65: #{tpu_custom_call.1} parent=5 // pred_check
        %p381 = pneg %p380
      $region66: #{tpu_custom_call.1} parent=5 // pred_check_branch
        %383 = sbr.rel (%p381) target = $region68
      $region67: #{tpu_custom_call.1} parent=5 // pred_region
        %s384 = ssub.s32 %s17, 2
        // Predicated region
        $region69: #{tpu_custom_call.1} parent=67 // pred_check
          %p385 = pneg %p240
        $region70: #{tpu_custom_call.1} parent=67 // pred_check_branch
          %387 = sbr.rel (%p385) target = $region72
        $region71: #{tpu_custom_call.1} parent=67 // pred_region
          %s388 = smul.u32 16, %s23
          %p389 = scmp.lt.s32.totalorder %s388, 31
          %s390 = scalar_select %p389, %s388, 31
          %s391 = smul.addr %s390, 8
          %s392 = scalar_lea.vmem %s9, %s391
        $region72: #{tpu_custom_call.1} parent=67 // pred_fallthru
          _
      $region68: #{tpu_custom_call.1} parent=5 // pred_fallthru
        _
    $region6: #{tpu_custom_call.1} parent=1 // loop_footer
      %s21 = sadd.s32 1, %s17
    $region7: #{tpu_custom_call.1} parent=1 // loop_footer_branch
      %16 = sbr.rel target = $region3
    $region8: #{tpu_custom_call.1} parent=1 // loop_exit
      _
    %393 = vsyncpa [#allocation4], 1
    %s394 = scalar_lea.sflag [#allocation4], 1
    %395 = vsyncpa %s394, 1

</llo_original>
